<compile_context>
chip_gen: v7x
topology: tpu7x:2x2x1
jax: 0.10.0
libtpu: 0.0.40
codegen_flags: <defaults>
</compile_context>

<pallas_src>
import functools

import jax
import jax.numpy as jnp
from jax.experimental import pallas as pl
from jax.experimental.pallas import tpu as pltpu


def _focal_loss_kernel(*refs, gamma, has_alpha):
    if has_alpha:
        target_ref, logits_ref, alpha_ref, out_ref = refs
    else:
        target_ref, logits_ref, out_ref = refs
        alpha_ref = None

    j = pl.program_id(1)  # spatial-tile index (reduction axis, "arbitrary")

    # Output block is resident across the j axis -> zero it once per batch
    # block, accumulate into it, Pallas writes it back when i changes.
    @pl.when(j == 0)
    def _():
        out_ref[...] = jnp.zeros_like(out_ref)

    x = logits_ref[...].astype(jnp.float32)            # (bn, C, hw_tile)
    bn, c, hw_t = x.shape

    # Numerically stable softmax pieces over the class (sublane) axis.
    m = jnp.max(x, axis=1, keepdims=True)              # (bn, 1, hw_t)
    shifted = x - m
    ex = jnp.exp(shifted)                               # (bn, C, hw_t)
    sum_ex = jnp.sum(ex, axis=1, keepdims=True)         # (bn, 1, hw_t)
    logp = shifted - jnp.log(sum_ex)                    # (bn, C, hw_t)

    # One-hot mask over C for the gather.  Padded pixels carry target == C
    # (out of range) -> all-zero mask -> zero contribution.
    t = target_ref[...]                                 # (bn, 1, hw_t) int32
    classes = jax.lax.broadcasted_iota(jnp.int32, (bn, c, hw_t), 1)
    onehot = (classes == t).astype(jnp.float32)

    # Fused masked reduce: alpha[t] * logpt in a single cross-sublane sum.
    if has_alpha:
        wlogp = alpha_ref[...].astype(jnp.float32) * logp    # (1,C,1) bcast
    else:
        wlogp = logp
    logpt_at = jnp.sum(onehot * wlogp, axis=1, keepdims=True)   # (bn,1,hw_t)

    # pt reuses exp(shifted): pt = exp(shifted[t]) / sum_exp (exact divide,
    # saves one EUP exp per pixel vs. exp(logpt)).
    ex_t = jnp.sum(onehot * ex, axis=1, keepdims=True)
    pt = ex_t / sum_ex

    u = 1.0 - pt
    g = float(gamma)
    if g == 0.0:
        w = jnp.ones_like(u)
    elif g.is_integer() and 0.0 < g <= 4.0:
        # pow -> repeated multiply (stays on the VPU, no EUP transcendentals)
        w = u
        for _ in range(int(g) - 1):
            w = w * u
    else:
        # Clamp so fractional gamma never sees a (slightly) negative base.
        w = jnp.maximum(u, 0.0) ** g

    # Lane-wide partial-sum accumulation into the resident output block.
    out_ref[...] += -(w * logpt_at)


def _vmem_budget_bytes():
    """Per-step working-set target, derived from the chip's VMEM capacity."""
    try:
        cap = int(pltpu.get_tpu_info().vmem_capacity_bytes)
    except Exception:  # no TPU info available -> assume v7x-like 64 MiB
        cap = 64 << 20
    return int(min(max(cap // 2, 16 << 20), 48 << 20)), cap


def _pick_tiles(n, c, hw_pad, in_dtype_bytes, vmem_budget_bytes):
    """Choose (hw_tile, bn).

    hw_tile: largest multiple of 128 dividing hw_pad that fits the VMEM
    budget; bn: batch-block width, grown when the spatial axis alone can't
    produce a big enough lane-dense block (keeps >=2 parallel grid points).
    """
    # Per lane-column, per batch-row footprint: double-buffered input block in
    # its HBM dtype + ~6 f32 (C, hw) temporaries + target/output columns.
    per_col = c * (2 * in_dtype_bytes + 6 * 4) + 32
    cap_cols = max(128, (vmem_budget_bytes // per_col) // 128 * 128)

    if hw_pad <= cap_cols:
        hw_tile = hw_pad
    else:
        hw_tile = 128
        t = 256
        while t <= cap_cols:
            if hw_pad % t == 0:
                hw_tile = t
            t += 128

    bn = 1
    target_in_bytes = 4 << 20  # aim for ~4 MiB of logits per grid step
    while True:
        nb = bn * 2
        if nb > n or n % nb != 0:
            break
        if nb * hw_tile > cap_cols:
            break
        if n >= 2 and n // nb < 2:
            break  # keep >= 2 grid points on the "parallel" axis (megacore)
        if bn * hw_tile * c * in_dtype_bytes >= target_in_bytes:
            break
        bn = nb
    return hw_tile, bn


def focal_loss2(x_nchw, target_nhw, *, gamma=2.0, alpha=None,
                size_average=True, hw_tile=None, bn=None):
    """Pallas implementation of FocalLoss2.forward.

    x_nchw:     (N, C, H, W) float logits (f32 or bf16)
    target_nhw: (N, H, W) int class ids in [0, C)
    alpha:      None, python float (binary case), or list of per-class weights
    """
    n, c, h, w = x_nchw.shape
    hw = h * w
    hw_pad = ((hw + 127) // 128) * 128

    # Free reshapes (no transpose): NCHW -> (N, C, HW), target -> (N, 1, HW).
    logits = x_nchw.reshape(n, c, hw)
    target = target_nhw.reshape(n, 1, hw).astype(jnp.int32)
    if hw_pad != hw:
        pad = hw_pad - hw
        logits = jnp.pad(logits, ((0, 0), (0, 0), (0, pad)))
        # Sentinel class C -> one-hot all-zero -> padded pixels contribute 0.
        target = jnp.pad(target, ((0, 0), (0, 0), (0, pad)), constant_values=c)

    # alpha setup mirroring __init__ (scalar -> [a, 1-a], list -> tensor).
    has_alpha = alpha is not None
    if has_alpha:
        if isinstance(alpha, (float, int)):
            assert c == 2, "scalar alpha implies 2 classes"
            alpha_vec = jnp.array([float(alpha), 1.0 - float(alpha)], jnp.float32)
        else:
            alpha_vec = jnp.asarray(alpha, jnp.float32)
            assert alpha_vec.shape[0] == c
        alpha_arr = alpha_vec.reshape(1, c, 1)

    in_bytes = jnp.dtype(logits.dtype).itemsize
    budget, vmem_cap = _vmem_budget_bytes()
    auto_tile, auto_bn = _pick_tiles(n, c, hw_pad, in_bytes, budget)
    if hw_tile is None:
        hw_tile = auto_tile
    if bn is None:
        bn = auto_bn
    assert hw_pad % hw_tile == 0 and n % bn == 0

    kernel = functools.partial(_focal_loss_kernel, gamma=float(gamma),
                               has_alpha=has_alpha)

    grid = (n // bn, hw_pad // hw_tile)
    in_specs = [
        # target (N, 1, HWp): HW on lanes
        pl.BlockSpec((bn, 1, hw_tile), lambda i, j: (i, 0, j)),
        # logits (N, C, HWp): C on sublanes, HW on lanes (lane-dense)
        pl.BlockSpec((bn, c, hw_tile), lambda i, j: (i, 0, j)),
    ]
    inputs = [target, logits]
    if has_alpha:
        # alpha (1, C, 1): resident constant block
        in_specs.append(pl.BlockSpec((1, c, 1), lambda i, j: (0, 0, 0)))
        inputs.append(alpha_arr)

    vmem_limit = int(min(budget + (16 << 20), max(vmem_cap - (8 << 20), budget)))

    partials = pl.pallas_call(
        kernel,
        out_shape=jax.ShapeDtypeStruct((n, 1, hw_tile), jnp.float32),
        grid_spec=pltpu.PrefetchScalarGridSpec(
            num_scalar_prefetch=0,
            grid=grid,
            in_specs=in_specs,
            # Output block resident across j -> per-batch-block accumulator.
            out_specs=pl.BlockSpec((bn, 1, hw_tile), lambda i, j: (i, 0, 0)),
        ),
        compiler_params=pltpu.CompilerParams(
            dimension_semantics=("parallel", "arbitrary"),
            vmem_limit_bytes=vmem_limit),
    )(*inputs)

    # Tiny final reduction (+ optional mean divide) in plain JAX.
    total = jnp.sum(partials)
    if size_average:
        total = total / jnp.float32(n * hw)  # real (unpadded) element count
    return total


def _reference(x_nchw, target_nhw, gamma, alpha_vec, size_average):
    n, c, h, w = x_nchw.shape
    logits = jnp.transpose(x_nchw, (0, 2, 3, 1)).reshape(-1, c)
    t = target_nhw.reshape(-1).astype(jnp.int32)
    logp = jax.nn.log_softmax(logits.astype(jnp.float32), axis=-1)
    logpt = jnp.take_along_axis(logp, t[:, None], axis=1)[:, 0]
    pt = jnp.exp(logpt)
    at = 1.0 if alpha_vec is None else alpha_vec[t]
    loss = -1.0 * (1.0 - pt) ** gamma * (logpt * at)
    return loss.mean() if size_average else loss.sum()


if __name__ == "__main__":
    key = jax.random.PRNGKey(0)
    kx, kt, kx2, kt2 = jax.random.split(key, 4)

    # Case 1: per-class alpha, mean reduction (HW already a multiple of 128).
    N, C, H, W = 2, 4, 16, 16
    x = jax.random.normal(kx, (N, C, H, W), dtype=jnp.float32)
    tgt = jax.random.randint(kt, (N, H, W), 0, C, dtype=jnp.int32)
    alpha = [0.25, 0.75, 0.5, 1.0]

    loss = jax.block_until_ready(
        focal_loss2(x, tgt, gamma=2.0, alpha=alpha, size_average=True))
    ref = _reference(x, tgt, 2.0, jnp.array(alpha, jnp.float32), True)
    assert jnp.allclose(loss, ref, rtol=1e-5, atol=1e-6), (loss, ref)

    # Case 2: sum reduction.
    loss_sum = jax.block_until_ready(
        focal_loss2(x, tgt, gamma=2.0, alpha=alpha, size_average=False))
    ref_sum = _reference(x, tgt, 2.0, jnp.array(alpha, jnp.float32), False)
    assert jnp.allclose(loss_sum, ref_sum, rtol=1e-5, atol=1e-4), (loss_sum, ref_sum)

    # Case 3: alpha=None and odd spatial size (exercises the HW->128 padding
    # path with the sentinel target class).
    N2, C2, H2, W2 = 2, 4, 15, 15
    x2 = jax.random.normal(kx2, (N2, C2, H2, W2), dtype=jnp.float32)
    tgt2 = jax.random.randint(kt2, (N2, H2, W2), 0, C2, dtype=jnp.int32)
    loss2 = jax.block_until_ready(
        focal_loss2(x2, tgt2, gamma=2.0, alpha=None, size_average=True))
    ref2 = _reference(x2, tgt2, 2.0, None, True)
    assert jnp.allclose(loss2, ref2, rtol=1e-5, atol=1e-6), (loss2, ref2)

    print("KERNEL_OK")
</pallas_src>

<mosaic_0001>
module attributes {stable_mosaic.version = 11 : i64} {
  func.func @_focal_loss_kernel(%arg0: i32, %arg1: i32, %arg2: memref<1x1x256xi32, #tpu.memory_space<vmem>>, %arg3: memref<1x4x256xf32, #tpu.memory_space<vmem>>, %arg4: memref<1x4x1xf32, #tpu.memory_space<vmem>>, %arg5: memref<1x1x256xf32, #tpu.memory_space<vmem>>) attributes {dimension_semantics = [#tpu.dimension_semantics<parallel>, #tpu.dimension_semantics<arbitrary>], iteration_bounds = array<i64: 2, 1>, scalar_prefetch = 0 : i64, scratch_operands = 0 : i64, tpu.core_type = #tpu.core_type<tc>, window_params = [{transform_indices = @transform_0, window_bounds = array<i64: 1, 1, 256>}, {transform_indices = @transform_1, window_bounds = array<i64: 1, 4, 256>}, {pipeline_mode = #tpu.pipeline_mode<synchronous>, transform_indices = @transform_2, window_bounds = array<i64: 1, 4, 1>}, {transform_indices = @transform_3, window_bounds = array<i64: 1, 1, 256>}]} {
    %c0_i32 = arith.constant 0 : i32
    %0 = arith.cmpi eq, %arg1, %c0_i32 : i32
    %1 = arith.extui %0 : i1 to i32
    %c0_i32_0 = arith.constant 0 : i32
    %2 = arith.cmpi ne, %1, %c0_i32_0 : i32
    scf.if %2 {
      %cst_20 = arith.constant 0.000000e+00 : f32
      %39 = vector.broadcast %cst_20 : f32 to vector<1x1x256xf32>
      %c0_21 = arith.constant 0 : index
      %c0_22 = arith.constant 0 : index
      %c0_23 = arith.constant 0 : index
      %40 = vector.load %arg5[%c0_21, %c0_22, %c0_23] : memref<1x1x256xf32, #tpu.memory_space<vmem>>, vector<1x1x256xf32>
      tpu.vector_store %arg5[%c0_21, %c0_22, %c0_23], %39 {strides = array<i32>} : memref<1x1x256xf32, #tpu.memory_space<vmem>>, vector<1x1x256xf32>,
    } else {
    }
    %c0 = arith.constant 0 : index
    %c0_1 = arith.constant 0 : index
    %c0_2 = arith.constant 0 : index
    %3 = vector.load %arg3[%c0, %c0_1, %c0_2] : memref<1x4x256xf32, #tpu.memory_space<vmem>>, vector<1x4x256xf32>
    %cst = arith.constant dense<0xFF800000> : vector<1x256xf32>
    %4 = vector.multi_reduction <maximumf>, %3, %cst [1] : vector<1x4x256xf32> to vector<1x256xf32>
    %5 = vector.shape_cast %4 : vector<1x256xf32> to vector<1x1x256xf32>
    %6 = vector.broadcast %5 : vector<1x1x256xf32> to vector<1x4x256xf32>
    %7 = arith.subf %3, %6 : vector<1x4x256xf32>
    %8 = math.exp %7 : vector<1x4x256xf32>
    %cst_3 = arith.constant dense<0.000000e+00> : vector<1x256xf32>
    %9 = vector.multi_reduction <add>, %8, %cst_3 [1] : vector<1x4x256xf32> to vector<1x256xf32>
    %10 = vector.shape_cast %9 : vector<1x256xf32> to vector<1x1x256xf32>
    %11 = math.log %10 : vector<1x1x256xf32>
    %12 = vector.broadcast %11 : vector<1x1x256xf32> to vector<1x4x256xf32>
    %13 = arith.subf %7, %12 : vector<1x4x256xf32>
    %c0_4 = arith.constant 0 : index
    %c0_5 = arith.constant 0 : index
    %c0_6 = arith.constant 0 : index
    %14 = vector.load %arg2[%c0_4, %c0_5, %c0_6] : memref<1x1x256xi32, #tpu.memory_space<vmem>>, vector<1x1x256xi32>
    %15 = tpu.iota {dimensions = array<i32: 1>} : vector<1x4x256xi32>
    %16 = vector.broadcast %14 : vector<1x1x256xi32> to vector<1x4x256xi32>
    %17 = arith.cmpi eq, %15, %16 : vector<1x4x256xi32>
    %18 = arith.extui %17 : vector<1x4x256xi1> to vector<1x4x256xi32>
    %19 = arith.sitofp %18 : vector<1x4x256xi32> to vector<1x4x256xf32>
    %c0_7 = arith.constant 0 : index
    %c0_8 = arith.constant 0 : index
    %c0_9 = arith.constant 0 : index
    %20 = vector.load %arg4[%c0_7, %c0_8, %c0_9] : memref<1x4x1xf32, #tpu.memory_space<vmem>>, vector<1x4x1xf32>
    %21 = vector.broadcast %20 : vector<1x4x1xf32> to vector<1x4x256xf32>
    %22 = arith.mulf %21, %13 : vector<1x4x256xf32>
    %23 = arith.mulf %19, %22 : vector<1x4x256xf32>
    %cst_10 = arith.constant dense<0.000000e+00> : vector<1x256xf32>
    %24 = vector.multi_reduction <add>, %23, %cst_10 [1] : vector<1x4x256xf32> to vector<1x256xf32>
    %25 = vector.shape_cast %24 : vector<1x256xf32> to vector<1x1x256xf32>
    %26 = arith.mulf %19, %8 : vector<1x4x256xf32>
    %cst_11 = arith.constant dense<0.000000e+00> : vector<1x256xf32>
    %27 = vector.multi_reduction <add>, %26, %cst_11 [1] : vector<1x4x256xf32> to vector<1x256xf32>
    %28 = vector.shape_cast %27 : vector<1x256xf32> to vector<1x1x256xf32>
    %29 = arith.divf %28, %10 : vector<1x1x256xf32>
    %cst_12 = arith.constant 1.000000e+00 : f32
    %30 = vector.broadcast %cst_12 : f32 to vector<1x1x256xf32>
    %31 = arith.subf %30, %29 : vector<1x1x256xf32>
    %32 = arith.mulf %31, %31 : vector<1x1x256xf32>
    %c0_13 = arith.constant 0 : index
    %c0_14 = arith.constant 0 : index
    %c0_15 = arith.constant 0 : index
    %33 = vector.load %arg5[%c0_13, %c0_14, %c0_15] : memref<1x1x256xf32, #tpu.memory_space<vmem>>, vector<1x1x256xf32>
    %34 = arith.mulf %32, %25 : vector<1x1x256xf32>
    %cst_16 = arith.constant 0.000000e+00 : f32
    %35 = vector.broadcast %cst_16 : f32 to vector<1x1x256xf32>
    %36 = arith.subf %35, %34 : vector<1x1x256xf32>
    %37 = arith.addf %33, %36 : vector<1x1x256xf32>
    %c0_17 = arith.constant 0 : index
    %c0_18 = arith.constant 0 : index
    %c0_19 = arith.constant 0 : index
    %38 = vector.load %arg5[%c0_17, %c0_18, %c0_19] : memref<1x1x256xf32, #tpu.memory_space<vmem>>, vector<1x1x256xf32>
    tpu.vector_store %arg5[%c0_17, %c0_18, %c0_19], %37 {strides = array<i32>} : memref<1x1x256xf32, #tpu.memory_space<vmem>>, vector<1x1x256xf32>,
    return
  }
  func.func @transform_0(%arg0: i32, %arg1: i32) -> (i32, i32, i32) {
    %c0_i32 = arith.constant 0 : i32
    %c0_i32_0 = arith.constant 0 : i32
    return %arg0, %c0_i32, %arg1 : i32, i32, i32
  }
  func.func @transform_1(%arg0: i32, %arg1: i32) -> (i32, i32, i32) {
    %c0_i32 = arith.constant 0 : i32
    %c0_i32_0 = arith.constant 0 : i32
    return %arg0, %c0_i32, %arg1 : i32, i32, i32
  }
  func.func @transform_2(%arg0: i32, %arg1: i32) -> (i32, i32, i32) {
    %c0_i32 = arith.constant 0 : i32
    %c0_i32_0 = arith.constant 0 : i32
    %c0_i32_1 = arith.constant 0 : i32
    %c0_i32_2 = arith.constant 0 : i32
    return %c0_i32, %c0_i32_0, %c0_i32_1 : i32, i32, i32
  }
  func.func @transform_3(%arg0: i32, %arg1: i32) -> (i32, i32, i32) {
    %c0_i32 = arith.constant 0 : i32
    %c0_i32_0 = arith.constant 0 : i32
    %c0_i32_1 = arith.constant 0 : i32
    return %arg0, %c0_i32, %c0_i32_0 : i32, i32, i32
  }
}

</mosaic_0001>

<llo_original>
// kernel: tpu_custom_call.1
$region0: #{tpu_custom_call.1}
  #allocation0 [shape = 'u32[]', space=smem, size = 0x4, offset = 0x4, fixed_abs, tag = 'smem constant byte address 0x4 - core index']
  #allocation1 [shape = 'u32[144,128]{1,0:T(1,128)}', space=vmem, size = 0x12000, scoped, tag = 'internal scratch']
  %s0 = inlined_call_operand.vmem [shape: s32[2,1,256], index: 0, kind: input, shape index: {}]
  %s1 = inlined_call_operand.hbm [shape: f32[2,4,256], index: 1, kind: input, shape index: {}]
  %s2 = inlined_call_operand.vmem [shape: f32[1,4,1], index: 2, kind: input, shape index: {}]
  %s3 = inlined_call_operand.hbm [shape: f32[2,1,256], index: 3, kind: output, shape index: {}]
  %s4 = sld [smem:[#allocation0]]
  $region53: #{tpu_custom_call.1} parent=0
    _
  %s6 = ssub.s32 1, %s4
  %s7 = scalar_select 0, %s6, %s4
  $region1: #{tpu_custom_call.1} parent=0
    #allocation2 [shape = 'u8[8192]{0}', space=vmem, size = 0x2000, scoped, tag = 'input window, operand 1']
    #allocation3 [shape = 's32[2]{0}', space=sflag, size = 0x8, scoped, tag = 'scoped memory for tpu_custom_call.1']
    #allocation4 [shape = 's32[2]{0}', space=sflag, size = 0x8, scoped, tag = 'scoped memory for tpu_custom_call.1']
    #allocation5 [shape = 'u8[2048]{0}', space=vmem, size = 0x800, scoped, tag = 'output window, operand 0']
    %8 = vsyncpa [#allocation3], 0
    %s9 = scalar_lea.sflag [#allocation3], 1
    %10 = vsyncpa %s9, 0
    %11 = vsyncpa [#allocation4], 0
    %s12 = scalar_lea.sflag [#allocation4], 1
    %13 = vsyncpa %s12, 0
    loop: start=0, step=1, limit=4
    $region2: #{tpu_custom_call.1} parent=1 // loop_pre_header
      _
    $region3: #{tpu_custom_call.1} parent=1 // loop_header
      %s15 = sphi 0, %s19
      %p16 = scmp.ge.s32.totalorder %s15, 4
      %s22 = sphi 0, %s34
      %s23 = sphi 0, %s30
      %s24 = sphi 0, %s22
      %s25 = sphi 0, %s23
      %s26 = sphi 0, %s24
      %s27 = sphi 0, %s25
      %s39 = sphi 0, %s41
      %s42 = sphi 0, %s39
      %s43 = sphi 0, %s42
      %s59 = sphi 0, %s43
      %s67 = sphi 0, %s69
      %s70 = sphi 0, %s67
      %s71 = sphi 0, %s70
      %s87 = sphi 0, %s71
      %s91 = sphi 0, %s91
      %s93 = sphi 0, %s91
      %s94 = sphi 0, %s93
      %s108 = sphi 0, %s94
      %s114 = sphi 0, %s116
      %s117 = sphi 0, %s114
      %s118 = sphi 0, %s117
      %s134 = sphi 0, %s118
    $region4: #{tpu_custom_call.1} parent=1 // loop_header_branch
      %18 = sbr.rel (%p16) target = $region8
    $region5: #{tpu_custom_call.1} parent=1 // loop_body
      %s20 = ssub.s32 %s15, 1
      %s21 = ssub.s32 %s15, 2
      %s28 = sadd.s32 1, %s23
      %p29 = scmp.ge.s32.totalorder %s28, 1
      %s30 = scalar_select %p29, 0, %s28
      %s31 = sadd.s32 1, %s22
      %s32 = scalar_select %p29, %s31, %s22
      %p33 = scmp.ge.s32.totalorder %s32, 2
      %s34 = scalar_select %p33, 0, %s32
      %s35 = ssub.s32 %s22, %s34
      %s36 = ssub.s32 %s23, %s30
      %s37 = sor.u32 %s35, %s36
      %p38 = scmp.eq.s32.totalorder %s37, 0
      %s40 = sadd.s32 %s39, 1
      %s41 = scalar_select %p38, %s39, %s40
      %p44 = pneg %p38
      %p45 = scmp.eq.s32.totalorder %s15, 1
      %p46 = por %p44, %p45
      %p47 = scmp.ne.s32.totalorder %s39, %s42
      %p48 = scmp.eq.s32.totalorder %s15, 0
      %p49 = por %p47, %p48
      %p50 = scmp.ne.s32.totalorder %s39, %s42
      %p51 = scmp.eq.s32.totalorder %s20, 1
      %p52 = por %p50, %p51
      %p53 = scmp.ne.s32.totalorder %s42, %s43
      %p54 = scmp.eq.s32.totalorder %s20, 0
      %p55 = por %p53, %p54
      %p56 = scmp.ne.s32.totalorder %s42, %s43
      %p57 = scmp.eq.s32.totalorder %s21, 1
      %p58 = por %p56, %p57
      %p60 = scmp.ne.s32.totalorder %s43, %s59
      %p61 = scmp.eq.s32.totalorder %s21, 0
      %p62 = por %p60, %p61
      %s63 = ssub.s32 %s22, %s34
      %s64 = ssub.s32 %s23, %s30
      %s65 = sor.u32 %s63, %s64
      %p66 = scmp.eq.s32.totalorder %s65, 0
      %s68 = sadd.s32 %s67, 1
      %s69 = scalar_select %p66, %s67, %s68
      %p72 = pneg %p66
      %p73 = scmp.eq.s32.totalorder %s15, 1
      %p74 = por %p72, %p73
      %p75 = scmp.ne.s32.totalorder %s67, %s70
      %p76 = scmp.eq.s32.totalorder %s15, 0
      %p77 = por %p75, %p76
      %p78 = scmp.ne.s32.totalorder %s67, %s70
      %p79 = scmp.eq.s32.totalorder %s20, 1
      %p80 = por %p78, %p79
      %p81 = scmp.ne.s32.totalorder %s70, %s71
      %p82 = scmp.eq.s32.totalorder %s20, 0
      %p83 = por %p81, %p82
      %p84 = scmp.ne.s32.totalorder %s70, %s71
      %p85 = scmp.eq.s32.totalorder %s21, 1
      %p86 = por %p84, %p85
      %p88 = scmp.ne.s32.totalorder %s71, %s87
      %p89 = scmp.eq.s32.totalorder %s21, 0
      %p90 = por %p88, %p89
      %s92 = sadd.s32 %s91, 1
      %p95 = scmp.eq.s32.totalorder %s15, 1
      %p96 = scmp.ne.s32.totalorder %s91, %s93
      %p97 = scmp.eq.s32.totalorder %s15, 0
      %p98 = por %p96, %p97
      %p99 = scmp.ne.s32.totalorder %s91, %s93
      %p100 = scmp.eq.s32.totalorder %s20, 1
      %p101 = por %p99, %p100
      %p102 = scmp.ne.s32.totalorder %s93, %s94
      %p103 = scmp.eq.s32.totalorder %s20, 0
      %p104 = por %p102, %p103
      %p105 = scmp.ne.s32.totalorder %s93, %s94
      %p106 = scmp.eq.s32.totalorder %s21, 1
      %p107 = por %p105, %p106
      %p109 = scmp.ne.s32.totalorder %s94, %s108
      %p110 = scmp.eq.s32.totalorder %s21, 0
      %p111 = por %p109, %p110
      %s112 = ssub.s32 %s22, %s34
      %p113 = scmp.eq.s32.totalorder %s112, 0
      %s115 = sadd.s32 %s114, 1
      %s116 = scalar_select %p113, %s114, %s115
      %p119 = pneg %p113
      %p120 = scmp.eq.s32.totalorder %s15, 1
      %p121 = por %p119, %p120
      %p122 = scmp.ne.s32.totalorder %s114, %s117
      %p123 = scmp.eq.s32.totalorder %s15, 0
      %p124 = por %p122, %p123
      %p125 = scmp.ne.s32.totalorder %s114, %s117
      %p126 = scmp.eq.s32.totalorder %s20, 1
      %p127 = por %p125, %p126
      %p128 = scmp.ne.s32.totalorder %s117, %s118
      %p129 = scmp.eq.s32.totalorder %s20, 0
      %p130 = por %p128, %p129
      %p131 = scmp.ne.s32.totalorder %s117, %s118
      %p132 = scmp.eq.s32.totalorder %s21, 1
      %p133 = por %p131, %p132
      %p135 = scmp.ne.s32.totalorder %s118, %s134
      %p136 = scmp.eq.s32.totalorder %s21, 0
      %p137 = por %p135, %p136
      %p138 = scmp.le.s32.totalorder 1, %s15
      %p139 = scmp.lt.s32.totalorder %s15, 3
      %p140 = pnand %p138, %p139
      %p141 = pneg %p140
      // Predicated region
      $region9: #{tpu_custom_call.1} parent=5 // pred_check
        _
      $region10: #{tpu_custom_call.1} parent=5 // pred_check_branch
        %143 = sbr.rel (%p140) target = $region12
      $region11: #{tpu_custom_call.1} parent=5 // pred_region
        %s144 = ssub.s32 %s15, 1
        // Predicated region
        $region13: #{tpu_custom_call.1} parent=11 // pred_check
          %p145 = pneg %p104
        $region14: #{tpu_custom_call.1} parent=11 // pred_check_branch
          %147 = sbr.rel (%p145) target = $region16
        $region15: #{tpu_custom_call.1} parent=11 // pred_region
          _
        $region16: #{tpu_custom_call.1} parent=11 // pred_fallthru
          _
      $region12: #{tpu_custom_call.1} parent=5 // pred_fallthru
        _
      %p148 = scmp.lt.s32.totalorder %s15, 2
      // Predicated region
      $region17: #{tpu_custom_call.1} parent=5 // pred_check
        %p149 = pneg %p148
      $region18: #{tpu_custom_call.1} parent=5 // pred_check_branch
        %151 = sbr.rel (%p149) target = $region20
      $region19: #{tpu_custom_call.1} parent=5 // pred_region
        // Predicated region
        $region21: #{tpu_custom_call.1} parent=19 // pred_check
          %p152 = pneg %p49
        $region22: #{tpu_custom_call.1} parent=19 // pred_check_branch
          %154 = sbr.rel (%p152) target = $region24
        $region23: #{tpu_custom_call.1} parent=19 // pred_region
          %s155 = smul.u32 2, %s23
          %p156 = scmp.lt.s32.totalorder %s22, 1
          %s157 = scalar_select %p156, %s22, 1
          %p158 = scmp.lt.s32.totalorder %s155, 1
          %s159 = scalar_select %p158, %s155, 1
          %s160 = smul.addr %s157, 2
          %s161 = sadd.s32 %s159, %s160
          %s162 = scalar_lea.vmem %s0, %s161
          %s163 = smul.u32 2, %s23
        $region24: #{tpu_custom_call.1} parent=19 // pred_fallthru
          _
        // Predicated region
        $region25: #{tpu_custom_call.1} parent=19 // pred_check
          %p164 = pneg %p77
        $region26: #{tpu_custom_call.1} parent=19 // pred_check_branch
          %166 = sbr.rel (%p164) target = $region28
        $region27: #{tpu_custom_call.1} parent=19 // pred_region
          %s167 = sand.u32 %s67, 1
          %s168 = scalar_lea.sflag [#allocation3], %s167
          %s169 = sand.u32 %s67, 1
          %s170 = smul.addr %s169, 8
          %s171 = scalar_lea.vmem [#allocation2], %s170
          %s172 = smul.u32 2, %s23
          %s174 = ssub.s32 128, 128
          %175 = vsyncadd %s168, %s174
          %s176 = smul.addr %s22, 2
          %s177 = sadd.s32 %s172, %s176
          %s178 = smul.addr %s177, 64
          %s179 = scalar_lea.hbm %s1, %s178
          %s181 = sshll.u32 %s171, 4
          %s182 = int_to_ptr.vmem [resolvable:$true] %s181
          %184 = dma.hbm_to_vmem [thread:$0]  %s179, 128, %s182, %s168
        $region28: #{tpu_custom_call.1} parent=19 // pred_fallthru
          _
      $region20: #{tpu_custom_call.1} parent=5 // pred_fallthru
        _
      %p185 = scmp.le.s32.totalorder 1, %s15
      %p186 = scmp.lt.s32.totalorder %s15, 3
      %p187 = pnand %p185, %p186
      %p188 = pneg %p187
      // Predicated region
      $region29: #{tpu_custom_call.1} parent=5 // pred_check
        _
      $region30: #{tpu_custom_call.1} parent=5 // pred_check_branch
        %190 = sbr.rel (%p187) target = $region32
      $region31: #{tpu_custom_call.1} parent=5 // pred_region
        %s191 = ssub.s32 %s15, 1
        %s192 = sand.u32 %s70, 1
        %s193 = scalar_lea.sflag [#allocation3], %s192
        %s194 = sand.u32 %s70, 1
        %s195 = smul.addr %s194, 8
        %s196 = scalar_lea.vmem [#allocation2], %s195
        // Predicated region
        $region33: #{tpu_custom_call.1} parent=31 // pred_check
          %p197 = pneg %p83
        $region34: #{tpu_custom_call.1} parent=31 // pred_check_branch
          %199 = sbr.rel (%p197) target = $region36
        $region35: #{tpu_custom_call.1} parent=31 // pred_region
          %200 = dma.done %s193, 128
        $region36: #{tpu_custom_call.1} parent=31 // pred_fallthru
          _
        %s201 = smul.u32 2, %s25
        %p202 = scmp.lt.s32.totalorder %s24, 1
        %s203 = scalar_select %p202, %s24, 1
        %p204 = scmp.lt.s32.totalorder %s201, 1
        %s205 = scalar_select %p204, %s201, 1
        %s206 = smul.addr %s203, 2
        %s207 = sadd.s32 %s205, %s206
        %s208 = scalar_lea.vmem %s0, %s207
        %p209 = pneg %p55
        %p210 = pneg %p52
        %s211 = sand.u32 %s70, 1
        %s212 = scalar_lea.sflag [#allocation3], %s211
        %s213 = sand.u32 %s70, 1
        %s214 = smul.addr %s213, 8
        %s215 = scalar_lea.vmem [#allocation2], %s214
        %p216 = pneg %p83
        %p217 = pneg %p80
        %p218 = pneg %p104
        %p219 = pneg %p101
        %p220 = pneg %p130
        %p221 = pneg %p127
        %s222 = sand.u32 %s117, 1
        %s223 = scalar_lea.sflag [#allocation4], %s222
        %s224 = sand.u32 %s117, 1
        %s225 = smul.addr %s224, 2
        %s226 = scalar_lea.vmem [#allocation5], %s225
        %s227 = smul.u32 2, %s25
        %p228 = scmp.lt.s32.totalorder %s24, 1
        %s229 = scalar_select %p228, %s24, 1
        %p230 = scmp.lt.s32.totalorder %s227, 1
        %s231 = scalar_select %p230, %s227, 1
        %s232 = smul.addr %s229, 2
        %s233 = sadd.s32 %s231, %s232
        %s234 = scalar_lea.vmem %s0, %s233
        %s235 = smul.u32 2, %s25
        %s236 = smul.u32 2, %s25
        %p237 = scmp.eq.s32.totalorder %s25, 0
        // Predicated region
        $region37: #{tpu_custom_call.1} parent=31 // pred_check
          %p238 = pneg %p237
        $region38: #{tpu_custom_call.1} parent=31 // pred_check_branch
          %240 = sbr.rel (%p238) target = $region40
        $region39: #{tpu_custom_call.1} parent=31 // pred_region
          %v241 = vlaneseq
          %vm242 = vcmp.ge.s32.totalorder %v241, 0
          %vm243 = vcmp.lt.s32.totalorder %v241, 256
          %vm244 = vmand %vm242, %vm243
          %245 = vst.msk [vmem:[%s226] sm:$0x3] %vm244, 0.0
        $region40: #{tpu_custom_call.1} parent=31 // pred_fallthru
          _
        %v246 = vld [vmem:[%s196] sm:$0xff]
        %v248 = vcombine.high %v246, %v246
        %vm250 = vcmask 1043456
        %v251 = vsel %vm250, %v246, -inf
        %v252 = vrot.slane %v251, 4
        %v253 = vmax.f32 %v251, %v252
        %v254 = vrot.slane %v253, 2
        %v255 = vmax.f32 %v253, %v254
        %v256 = vrot.slane %v255, 1
        %v257 = vmax.f32 %v255, %v256
        %v258 = vsel %vm250, %v248, -inf
        %v259 = vrot.slane %v258, 4
        %v260 = vmax.f32 %v258, %v259
        %v261 = vrot.slane %v260, 2
        %v262 = vmax.f32 %v260, %v261
        %v263 = vrot.slane %v262, 1
        %v264 = vmax.f32 %v262, %v263
        %v267 = vcombine.low %v257, %v264
        %v269 = vsub.f32 %v246, %v267
        %v270 = vmul.f32 %v269, 1.442695
        %v271 = vpow.pop %v270
        %v273 = vcombine.high %v271, %v271
        %v275 = vsel %vm250, %v271, 0.0
        %v276 = vrot.slane %v275, 4
        %v277 = vadd.f32 %v275, %v276
        %v278 = vrot.slane %v277, 2
        %v279 = vadd.f32 %v277, %v278
        %v280 = vrot.slane %v279, 1
        %v281 = vadd.f32 %v279, %v280
        %v282 = vsel %vm250, %v273, 0.0
        %v283 = vrot.slane %v282, 4
        %v284 = vadd.f32 %v282, %v283
        %v285 = vrot.slane %v284, 2
        %v286 = vadd.f32 %v284, %v285
        %v287 = vrot.slane %v286, 1
        %v288 = vadd.f32 %v286, %v287
        %v289 = vlog2.pop %v281
        %v290 = vmul.f32 %v289, 0.6931472
        %v291 = vlog2.pop %v288
        %v292 = vmul.f32 %v291, 0.6931472
        %v295 = vcombine.low %v290, %v292
        %v297 = vsub.f32 %v269, %v295
        %v298 = vld [vmem:[%s234] sm:$0x3]
        %v299 = vlaneseq
        %v300 = vshrl.u32 %v299, 7
        %v301 = vlaneseq
        %v302 = vshrl.u32 %v301, 7
        %v303 = vsub.s32 0, %v302
        %v304 = vrot.slane %v298, %v303
        %v305 = vlaneseq
        %v306 = vshrl.u32 %v305, 7
        %v307 = vsub.s32 1, %v306
        %v308 = vrot.slane %v298, %v307
        %vm309 = vcmp.eq.s32.totalorder %v300, %v304
        %vm310 = vcmp.eq.s32.totalorder %v300, %v308
        %v311 = vsel %vm309, 1, 0
        %v312 = vsel %vm310, 1, 0
        %v313 = vcvt.s32.f32 %v311
        %v314 = vcvt.s32.f32 %v312
        %v315 = vld [vmem:[%s2] sm:$0xf]
        %317 = vset.pattern.permute.xlu0 0
        %318 = vperm.xlu0 %317, %v315
        %v319 = vpop.permute.xlu0 %318
        %v322 = vcombine.high %v297, %v297
        %v324 = vmul.f32 %v319, %v297
        %v325 = vmul.f32 %v319, %v322
        %v326 = vmul.f32 %v313, %v324
        %v327 = vmul.f32 %v314, %v325
        %v328 = vsel %vm250, %v326, 0.0
        %v329 = vrot.slane %v328, 4
        %v330 = vadd.f32 %v328, %v329
        %v331 = vrot.slane %v330, 2
        %v332 = vadd.f32 %v330, %v331
        %v333 = vrot.slane %v332, 1
        %v334 = vadd.f32 %v332, %v333
        %v335 = vsel %vm250, %v327, 0.0
        %v336 = vrot.slane %v335, 4
        %v337 = vadd.f32 %v335, %v336
        %v338 = vrot.slane %v337, 2
        %v339 = vadd.f32 %v337, %v338
        %v340 = vrot.slane %v339, 1
        %v341 = vadd.f32 %v339, %v340
        %v342 = vmul.f32 %v313, %v271
        %v343 = vmul.f32 %v314, %v273
        %v344 = vsel %vm250, %v342, 0.0
        %v345 = vrot.slane %v344, 4
        %v346 = vadd.f32 %v344, %v345
        %v347 = vrot.slane %v346, 2
        %v348 = vadd.f32 %v346, %v347
        %v349 = vrot.slane %v348, 1
        %v350 = vadd.f32 %v348, %v349
        %v351 = vsel %vm250, %v343, 0.0
        %v352 = vrot.slane %v351, 4
        %v353 = vadd.f32 %v351, %v352
        %v354 = vrot.slane %v353, 2
        %v355 = vadd.f32 %v353, %v354
        %v356 = vrot.slane %v355, 1
        %v357 = vadd.f32 %v355, %v356
        %v358 = vrcp.pop %v281
        %v359 = vmul.f32 %v350, %v358
        %v360 = vrcp.pop %v288
        %v361 = vmul.f32 %v357, %v360
        %v362 = vsub.f32 1.0, %v359
        %v363 = vsub.f32 1.0, %v361
        %v364 = vmul.f32 %v362, %v362
        %v365 = vmul.f32 %v363, %v363
        %v366 = vld [vmem:[%s226] sm:$0x3]
        %v367 = vmul.f32 %v364, %v334
        %v368 = vmul.f32 %v365, %v341
        %v369 = vsub.f32 0.0, %v367
        %v370 = vsub.f32 0.0, %v368
        %v373 = vcombine.low %v369, %v370
        %v375 = vunpack.c.l.s4 1966171168
        %v376 = vunpack.c.0.s8 %v375
        %v377 = vlaneseq
        %v378 = vshrl.u32 %v377, 7
        %v379 = vsub.s32 %v376, %v378
        %v380 = vrot.slane %v373, %v379
        %v382 = vunpack.c.l.s4 1966171168
        %v383 = vunpack.c.0.s8 %v382
        %v384 = vlaneseq
        %v385 = vshrl.u32 %v384, 7
        %v386 = vsub.s32 %v383, %v385
        %v387 = vrot.slane %v380, %v386
        %v389 = vadd.f32 %v366, %v387
        %v390 = vlaneseq
        %vm391 = vcmp.ge.s32.totalorder %v390, 0
        %vm392 = vcmp.lt.s32.totalorder %v390, 256
        %vm393 = vmand %vm391, %vm392
        %394 = vst.msk [vmem:[%s226] sm:$0x3] %vm393, %v389
        %s395 = sand.u32 %s117, 1
        %s396 = scalar_lea.sflag [#allocation4], %s395
        %s397 = sand.u32 %s117, 1
        %s398 = smul.addr %s397, 2
        %s399 = scalar_lea.vmem [#allocation5], %s398
        // Predicated region
        $region41: #{tpu_custom_call.1} parent=31 // pred_check
          %p400 = pneg %p127
        $region42: #{tpu_custom_call.1} parent=31 // pred_check_branch
          %402 = sbr.rel (%p400) target = $region44
        $region43: #{tpu_custom_call.1} parent=31 // pred_region
          %s404 = ssub.s32 32, 32
          %405 = vsyncadd %s396, %s404
          %s406 = smul.addr %s24, 2
          %s407 = smul.addr %s406, 16
          %s408 = scalar_lea.hbm %s3, %s407
          %s410 = sshll.u32 %s399, 4
          %s411 = int_to_ptr.vmem [resolvable:$true] %s410
          %413 = dma.vmem_to_hbm [thread:$0]  %s411, 32, %s408, %s396
        $region44: #{tpu_custom_call.1} parent=31 // pred_fallthru
          _
      $region32: #{tpu_custom_call.1} parent=5 // pred_fallthru
        _
      %p414 = scmp.le.s32.totalorder 2, %s15
      // Predicated region
      $region45: #{tpu_custom_call.1} parent=5 // pred_check
        %p415 = pneg %p414
      $region46: #{tpu_custom_call.1} parent=5 // pred_check_branch
        %417 = sbr.rel (%p415) target = $region48
      $region47: #{tpu_custom_call.1} parent=5 // pred_region
        %s418 = ssub.s32 %s15, 2
        // Predicated region
        $region49: #{tpu_custom_call.1} parent=47 // pred_check
          %p419 = pneg %p133
        $region50: #{tpu_custom_call.1} parent=47 // pred_check_branch
          %421 = sbr.rel (%p419) target = $region52
        $region51: #{tpu_custom_call.1} parent=47 // pred_region
          %s422 = sand.u32 %s118, 1
          %s423 = scalar_lea.sflag [#allocation4], %s422
          %s424 = sand.u32 %s118, 1
          %s425 = smul.addr %s424, 2
          %s426 = scalar_lea.vmem [#allocation5], %s425
          %427 = dma.done %s423, 32
        $region52: #{tpu_custom_call.1} parent=47 // pred_fallthru
          _
      $region48: #{tpu_custom_call.1} parent=5 // pred_fallthru
        _
    $region6: #{tpu_custom_call.1} parent=1 // loop_footer
      %s19 = sadd.s32 1, %s15
    $region7: #{tpu_custom_call.1} parent=1 // loop_footer_branch
      %14 = sbr.rel target = $region3
    $region8: #{tpu_custom_call.1} parent=1 // loop_exit
      _
    %428 = vsyncpa [#allocation3], 1
    %s429 = scalar_lea.sflag [#allocation3], 1
    %430 = vsyncpa %s429, 1
    %431 = vsyncpa [#allocation4], 1
    %s432 = scalar_lea.sflag [#allocation4], 1
    %433 = vsyncpa %s432, 1

</llo_original>
